<compile_context>
chip_gen: v7x
topology: tpu7x:2x2x1
jax: 0.10.0
libtpu: 0.0.40
codegen_flags: <defaults>
</compile_context>

<pallas_src>
import functools

import jax
import jax.numpy as jnp
from jax.experimental import pallas as pl
from jax.experimental.pallas import tpu as pltpu

LANE = 128


def fused_affine_kernel(w_ref, b_ref, x_ref, o_ref):
    # w_ref: SMEM (2,) fused weights; b_ref: SMEM (1,) fused bias.
    # x_ref: VMEM (2, tr, 128) SoA block (plane 0 = feature 0, plane 1 = feature 1).
    w0 = w_ref[0]
    w1 = w_ref[1]
    b = b_ref[0]
    # Pure VPU elementwise, lane-dense over N.
    o_ref[...] = x_ref[0] * w0 + x_ref[1] * w1 + b


def _pick_tile(n_planes, tile_rows):
    """Pick (tile_planes, padded_planes).

    Big tiles to amortize per-step overhead, multiple of 8 for (8,128)
    alignment, and >=2 grid blocks when possible so v7x megacore can split
    the parallel axis across its two TensorCores.
    """
    if n_planes <= 8:
        return n_planes, n_planes                     # single block == full array dims
    tile_rows = max(8, (tile_rows // 8) * 8)          # multiple of 8
    half = pl.cdiv(pl.cdiv(n_planes, 2), 8) * 8       # keep grid length >= 2
    tr = max(8, min(tile_rows, half))
    return tr, pl.cdiv(n_planes, tr) * tr


@functools.partial(jax.jit, static_argnames=("tile_rows",))
def mlp_forward(x, w1, b1, w2, b2, *, tile_rows=4096):
    """Two-layer linear MLP forward pass (fused), computed in a Pallas kernel.

    x  : (N, 2)  float32
    w1 : (2, 5)  float32  (transposed nn.Linear weight of shape (5, 2))
    b1 : (1, 5)  float32
    w2 : (5, 1)  float32  (transposed nn.Linear weight of shape (1, 5))
    b2 : (1, 1)  float32
    returns (N, 1) float32
    """
    N = x.shape[0]
    out_dtype = x.dtype
    if N == 0:
        return jnp.zeros((0, 1), out_dtype)

    x = x.astype(jnp.float32)

    # Algebraic fusion of the two affine layers, done with exact f32
    # elementwise ops (avoids any TPU matmul default-precision surprises):
    #   W[i] = sum_j w1[i,j] * w2[j,0]        (2,)
    #   B    = sum_j b1[0,j] * w2[j,0] + b2   (1,)
    w2c = w2[:, 0].astype(jnp.float32)                                   # (5,)
    W = jnp.sum(w1.astype(jnp.float32) * w2c[None, :], axis=1)           # (2,)
    B = (jnp.sum(b1[0].astype(jnp.float32) * w2c)
         + b2[0, 0].astype(jnp.float32)).reshape(1)                      # (1,)

    # SoA, lane-dense layout: N occupies the lane axis, stacked feature planes.
    R = pl.cdiv(N, LANE)                    # number of 128-wide row planes
    tr, r_pad = _pick_tile(R, tile_rows)
    n_pad = r_pad * LANE

    # One fused relayout pass under jit: pad + transpose + reshape.
    x_soa = jnp.pad(x, ((0, n_pad - N), (0, 0))).T.reshape(2, r_pad, LANE)

    smem_spec = pl.BlockSpec(memory_space=pltpu.MemorySpace.SMEM)
    x_spec = pl.BlockSpec((2, tr, LANE), lambda i: (0, i, 0))
    o_spec = pl.BlockSpec((tr, LANE), lambda i: (i, 0))

    out_plane = pl.pallas_call(
        fused_affine_kernel,
        out_shape=jax.ShapeDtypeStruct((r_pad, LANE), jnp.float32),
        grid=(r_pad // tr,),
        in_specs=[smem_spec, smem_spec, x_spec],
        out_specs=o_spec,
        compiler_params=pltpu.CompilerParams(
            dimension_semantics=("parallel",),
            vmem_limit_bytes=32 * 1024 * 1024),
    )(W, B, x_soa)

    # Row-major (r_pad, 128) is already record order -> free reshape; slicing
    # off the padding is the only extra copy (fused under the surrounding jit).
    out = out_plane.reshape(n_pad, 1)
    if n_pad != N:
        out = out[:N]
    return out.astype(out_dtype)


def init_params():
    """Deterministic init mimicking nn.Linear's uniform(-1/sqrt(fan_in), 1/sqrt(fan_in))."""
    key = jax.random.PRNGKey(42)
    k1, k2, k3, k4 = jax.random.split(key, 4)

    # layer_1: Linear(2 -> 5); PyTorch weight shape (5, 2), stored transposed (2, 5)
    bound1 = 1.0 / jnp.sqrt(2.0)
    w1 = jax.random.uniform(k1, (2, 5), jnp.float32, -bound1, bound1)
    b1 = jax.random.uniform(k2, (1, 5), jnp.float32, -bound1, bound1)

    # layer_2: Linear(5 -> 1); PyTorch weight shape (1, 5), stored transposed (5, 1)
    bound2 = 1.0 / jnp.sqrt(5.0)
    w2 = jax.random.uniform(k3, (5, 1), jnp.float32, -bound2, bound2)
    b2 = jax.random.uniform(k4, (1, 1), jnp.float32, -bound2, bound2)

    return w1, b1, w2, b2


if __name__ == "__main__":
    w1, b1, w2, b2 = init_params()
    hi = jax.lax.Precision.HIGHEST

    def reference(x):
        # Unfused reference at full f32 precision.
        return jnp.dot(jnp.dot(x, w1, precision=hi) + b1, w2, precision=hi) + b2

    # Small single-block case and a multi-block tiled case (exercises padding,
    # grid > 1 and the parallel axis).
    for n in (8, 2051):
        x = jax.random.normal(jax.random.PRNGKey(0), (n, 2), dtype=jnp.float32)
        out = jax.block_until_ready(mlp_forward(x, w1, b1, w2, b2))
        ref = reference(x)
        assert out.shape == (n, 1), out.shape
        assert jnp.allclose(out, ref, atol=1e-5, rtol=1e-5), f"mismatch vs reference at N={n}"

    print("KERNEL_OK")
</pallas_src>

<mosaic_0001>
module attributes {stable_mosaic.version = 11 : i64} {
  func.func @fused_affine_kernel(%arg0: i32, %arg1: memref<2xf32, #tpu.memory_space<smem>>, %arg2: memref<1xf32, #tpu.memory_space<smem>>, %arg3: memref<2x1x128xf32, #tpu.memory_space<vmem>>, %arg4: memref<1x128xf32, #tpu.memory_space<vmem>>) attributes {dimension_semantics = [#tpu.dimension_semantics<parallel>], iteration_bounds = array<i64: 1>, scalar_prefetch = 0 : i64, scratch_operands = 0 : i64, tpu.core_type = #tpu.core_type<tc>, window_params = [{transform_indices = @transform_0, window_bounds = array<i64: 2>}, {transform_indices = @transform_1, window_bounds = array<i64: 1>}, {transform_indices = @transform_2, window_bounds = array<i64: 2, 1, 128>}, {transform_indices = @transform_3, window_bounds = array<i64: 1, 128>}]} {
    %c0 = arith.constant 0 : index
    %0 = memref.load %arg1[%c0] : memref<2xf32, #tpu.memory_space<smem>>
    %c1 = arith.constant 1 : index
    %1 = memref.load %arg1[%c1] : memref<2xf32, #tpu.memory_space<smem>>
    %c0_0 = arith.constant 0 : index
    %2 = memref.load %arg2[%c0_0] : memref<1xf32, #tpu.memory_space<smem>>
    %c0_1 = arith.constant 0 : index
    %c0_2 = arith.constant 0 : index
    %c0_3 = arith.constant 0 : index
    %3 = vector.load %arg3[%c0_1, %c0_2, %c0_3] : memref<2x1x128xf32, #tpu.memory_space<vmem>>, vector<1x1x128xf32>
    %4 = vector.shape_cast %3 : vector<1x1x128xf32> to vector<1x128xf32>
    %5 = vector.broadcast %0 : f32 to vector<1x128xf32>
    %6 = arith.mulf %4, %5 : vector<1x128xf32>
    %c1_4 = arith.constant 1 : index
    %c0_5 = arith.constant 0 : index
    %c0_6 = arith.constant 0 : index
    %7 = vector.load %arg3[%c1_4, %c0_5, %c0_6] : memref<2x1x128xf32, #tpu.memory_space<vmem>>, vector<1x1x128xf32>
    %8 = vector.shape_cast %7 : vector<1x1x128xf32> to vector<1x128xf32>
    %9 = vector.broadcast %1 : f32 to vector<1x128xf32>
    %10 = arith.mulf %8, %9 : vector<1x128xf32>
    %11 = arith.addf %6, %10 : vector<1x128xf32>
    %12 = vector.broadcast %2 : f32 to vector<1x128xf32>
    %13 = arith.addf %11, %12 : vector<1x128xf32>
    %c0_7 = arith.constant 0 : index
    %c0_8 = arith.constant 0 : index
    %14 = vector.load %arg4[%c0_7, %c0_8] : memref<1x128xf32, #tpu.memory_space<vmem>>, vector<1x128xf32>
    tpu.vector_store %arg4[%c0_7, %c0_8], %13 {strides = array<i32>} : memref<1x128xf32, #tpu.memory_space<vmem>>, vector<1x128xf32>,
    return
  }
  func.func @transform_0(%arg0: i32) -> i32 {
    %c0_i32 = arith.constant 0 : i32
    %c0_i32_0 = arith.constant 0 : i32
    return %c0_i32 : i32
  }
  func.func @transform_1(%arg0: i32) -> i32 {
    %c0_i32 = arith.constant 0 : i32
    %c0_i32_0 = arith.constant 0 : i32
    return %c0_i32 : i32
  }
  func.func @transform_2(%arg0: i32) -> (i32, i32, i32) {
    %c0_i32 = arith.constant 0 : i32
    %c0_i32_0 = arith.constant 0 : i32
    %c0_i32_1 = arith.constant 0 : i32
    return %c0_i32, %arg0, %c0_i32_0 : i32, i32, i32
  }
  func.func @transform_3(%arg0: i32) -> (i32, i32) {
    %c0_i32 = arith.constant 0 : i32
    %c0_i32_0 = arith.constant 0 : i32
    return %arg0, %c0_i32 : i32, i32
  }
}

</mosaic_0001>

<llo_original>
// kernel: mlp_forward.1
$region0: #{mlp_forward.1}
  #allocation0 [shape = 'u32[]', space=smem, size = 0x4, offset = 0x4, fixed_abs, tag = 'smem constant byte address 0x4 - core index']
  #allocation1 [shape = 'u32[144,128]{1,0:T(1,128)}', space=vmem, size = 0x12000, scoped, tag = 'internal scratch']
  #allocation2 [shape = 'f32[1]{0:T(128)S(6)}', space=smem, size = 0x200, scoped, tag = 'scoped memory for mlp_forward.1']
  %s0 = inlined_call_operand.vmem [shape: f32[2], index: 0, kind: input, shape index: {}]
  %s1 = inlined_call_operand.<no memory space> [shape: f32[1], index: 1, kind: input, shape index: {}]
  %s2 = inlined_call_operand.vmem [shape: f32[2,1,128], index: 2, kind: input, shape index: {}]
  %s3 = inlined_call_operand.vmem [shape: f32[1,128], index: 3, kind: output, shape index: {}]
  %s4 = sld [smem:[#allocation0]]
  $region26: #{mlp_forward.1} parent=0
    _
  %s6 = ssub.s32 1, %s4
  %s7 = scalar_select 0, %s6, %s4
  %8 = sst [smem:[#allocation2]] %s1
  $region1: #{mlp_forward.1} parent=0
    #allocation3 [shape = 'u8[512]{0}', space=smem, size = 0x200, scoped, tag = 'input window, operand 0, single buffered']
    #allocation4 [shape = 's32[1]{0}', space=sflag, size = 0x4, scoped, tag = 'scoped memory for mlp_forward.1']
    %9 = vsyncpa [#allocation4], 0
    // Predicated region
    $region2: #{mlp_forward.1} parent=1 // pred_check
      _
    $region3: #{mlp_forward.1} parent=1 // pred_check_branch
      %11 = sbr.rel (0) target = $region5
    $region4: #{mlp_forward.1} parent=1 // pred_region
      %s13 = ssub.s32 16, 16
      %14 = vsyncadd [#allocation4], %s13
      %s16 = sshll.u32 %s0, 4
      %s17 = int_to_ptr.vmem [resolvable:$true] %s16
      %19 = dma.vmem_to_smem %s17, 16, [#allocation3], [#allocation4]
    $region5: #{mlp_forward.1} parent=1 // pred_fallthru
      _
    // Predicated region
    $region6: #{mlp_forward.1} parent=1 // pred_check
      _
    $region7: #{mlp_forward.1} parent=1 // pred_check_branch
      %21 = sbr.rel (0) target = $region9
    $region8: #{mlp_forward.1} parent=1 // pred_region
      _
    $region9: #{mlp_forward.1} parent=1 // pred_fallthru
      _
    // Predicated region
    $region10: #{mlp_forward.1} parent=1 // pred_check
      _
    $region11: #{mlp_forward.1} parent=1 // pred_check_branch
      %23 = sbr.rel (0) target = $region13
    $region12: #{mlp_forward.1} parent=1 // pred_region
      _
    $region13: #{mlp_forward.1} parent=1 // pred_fallthru
      _
    // Predicated region
    $region14: #{mlp_forward.1} parent=1 // pred_check
      _
    $region15: #{mlp_forward.1} parent=1 // pred_check_branch
      %25 = sbr.rel (0) target = $region17
    $region16: #{mlp_forward.1} parent=1 // pred_region
      %26 = dma.done [#allocation4], 16
    $region17: #{mlp_forward.1} parent=1 // pred_fallthru
      _
    %27 = sfence
    %s28 = sld [smem:[#allocation3]]
    %s29 = sld [smem:[#allocation3 + $0x1]]
    %s30 = sld [smem:[#allocation2]]
    %v31 = vld [vmem:[%s2] sm:$0x1]
    %v32 = vstv %s28
    %v33 = vmul.f32 %v31, %v32
    %s34 = scalar_lea.vmem %s2, 1
    %v35 = vld [vmem:[%s34] sm:$0x1]
    %v36 = vstv %s29
    %v37 = vmul.f32 %v35, %v36
    %v38 = vadd.f32 %v33, %v37
    %v39 = vstv %s30
    %v40 = vadd.f32 %v38, %v39
    %41 = vst [vmem:[%s3] sm:$0x1] %v40
    // Predicated region
    $region18: #{mlp_forward.1} parent=1 // pred_check
      _
    $region19: #{mlp_forward.1} parent=1 // pred_check_branch
      %43 = sbr.rel (0) target = $region21
    $region20: #{mlp_forward.1} parent=1 // pred_region
      _
    $region21: #{mlp_forward.1} parent=1 // pred_fallthru
      _
    // Predicated region
    $region22: #{mlp_forward.1} parent=1 // pred_check
      _
    $region23: #{mlp_forward.1} parent=1 // pred_check_branch
      %45 = sbr.rel (0) target = $region25
    $region24: #{mlp_forward.1} parent=1 // pred_region
      _
    $region25: #{mlp_forward.1} parent=1 // pred_fallthru
      _
    %46 = vsyncpa [#allocation4], 1

</llo_original>
